<compile_context>
chip_gen: v7x
topology: tpu7x:2x2x1
jax: 0.10.0
libtpu: 0.0.40
codegen_flags: <defaults>
</compile_context>

<pallas_src>
import functools

import jax
import jax.numpy as jnp
from jax.experimental import pallas as pl
from jax.experimental.pallas import tpu as pltpu


def _round_up(x, m):
    return ((x + m - 1) // m) * m


# -----------------------------------------------------------------------------
# Kernel 1: transposed conv matmul + per-tile partial BN statistics.
#   Yt_tile (C_out, tm) = Wt (C_out, K*C_in) @ Xt_tile (K*C_in, tm)
#   Per-tile partial sum / sum-of-squares over the node (lane) axis are written
#   to independent output blocks, so every grid step is independent and the H
#   axis can be "parallel" (both TensorCores on v7x).  The tiny reduction over
#   tiles happens in JAX glue.
# -----------------------------------------------------------------------------
def _conv_stats_kernel(xt_ref, wt_ref, yt_ref, sum_ref, sq_ref):
    y = jnp.dot(wt_ref[...], xt_ref[...], preferred_element_type=jnp.float32)
    yt_ref[...] = y
    sum_ref[...] = jnp.sum(y, axis=1, keepdims=True)[None]       # (1, C_out, 1)
    sq_ref[...] = jnp.sum(y * y, axis=1, keepdims=True)[None]    # (1, C_out, 1)


def _conv_and_partial_stats(xt, wt, *, tm):
    KC, H_pad = xt.shape
    C_out = wt.shape[0]
    num_tiles = H_pad // tm
    return pl.pallas_call(
        _conv_stats_kernel,
        out_shape=(
            jax.ShapeDtypeStruct((C_out, H_pad), jnp.float32),
            jax.ShapeDtypeStruct((num_tiles, C_out, 1), jnp.float32),
            jax.ShapeDtypeStruct((num_tiles, C_out, 1), jnp.float32),
        ),
        grid_spec=pltpu.PrefetchScalarGridSpec(
            num_scalar_prefetch=0,
            grid=(num_tiles,),
            in_specs=[
                pl.BlockSpec((KC, tm), lambda i: (0, i)),      # X^T tile
                pl.BlockSpec((C_out, KC), lambda i: (0, 0)),   # resident W^T
            ],
            out_specs=[
                pl.BlockSpec((C_out, tm), lambda i: (0, i)),   # lane-dense Y^T
                pl.BlockSpec((1, C_out, 1), lambda i: (i, 0, 0)),
                pl.BlockSpec((1, C_out, 1), lambda i: (i, 0, 0)),
            ],
        ),
        compiler_params=pltpu.CompilerParams(
            dimension_semantics=("parallel",),
            vmem_limit_bytes=32 * 1024 * 1024,
        ),
    )(xt, wt)


# -----------------------------------------------------------------------------
# Kernel 2: BatchNorm apply, out = y * scale + shift (per-channel = per-sublane
# in the transposed layout).  Output aliases the conv output (y is dead after).
# -----------------------------------------------------------------------------
def _bn_apply_kernel(yt_ref, ss_ref, o_ref):
    scale = ss_ref[:, 0:1]
    shift = ss_ref[:, 1:2]
    o_ref[...] = yt_ref[...] * scale + shift


def _bn_apply(yt, ss, *, tm):
    C_out, H_pad = yt.shape
    num_tiles = H_pad // tm
    return pl.pallas_call(
        _bn_apply_kernel,
        out_shape=jax.ShapeDtypeStruct((C_out, H_pad), jnp.float32),
        grid_spec=pltpu.PrefetchScalarGridSpec(
            num_scalar_prefetch=0,
            grid=(num_tiles,),
            in_specs=[
                pl.BlockSpec((C_out, tm), lambda i: (0, i)),
                pl.BlockSpec((C_out, 2), lambda i: (0, 0)),    # merged scale/shift
            ],
            out_specs=pl.BlockSpec((C_out, tm), lambda i: (0, i)),
        ),
        input_output_aliases={0: 0},
        compiler_params=pltpu.CompilerParams(
            dimension_semantics=("parallel",),
            vmem_limit_bytes=32 * 1024 * 1024,
        ),
    )(yt, ss)


@functools.partial(jax.jit, static_argnames=("eps", "tm_max"))
def octree_conv_bn(data_in, neigh, weights, gamma, beta, *, eps=1e-5, tm_max=1024):
    """Forward pass of OctreeConvBn.

    data_in: (1, C_in, H, 1) float32   -- NCHW octree features (H = #nodes)
    neigh:   (H, K) int32              -- octree neighbor indices, -1 = missing
    weights: (C_out, C_in, K) float32  -- OctreeConv weights (no bias)
    gamma, beta: (C_out,) float32      -- BatchNorm2d affine parameters
    returns: (1, C_out, H, 1) float32
    """
    _, C_in, H, _ = data_in.shape
    C_out, _, K = weights.shape

    # --- octree2col gather, transposed to (K*C_in, H) -----------------------
    data_ch = data_in[0, :, :, 0].astype(jnp.float32)             # (C_in, H)
    valid = neigh >= 0                                            # (H, K)
    idx = jnp.clip(neigh, 0, H - 1)
    gath = jnp.where(valid[None, :, :], data_ch[:, idx], 0.0)     # (C_in, H, K)
    xt = jnp.transpose(gath, (0, 2, 1)).reshape(C_in * K, H)      # (C_in*K, H)

    # --- tiling: lane-dense tiles, pad node axis with zero columns ----------
    tm_max = max(128, (tm_max // 128) * 128)
    tm = min(tm_max, _round_up(H, 128))
    H_pad = _round_up(H, tm)
    if H_pad != H:
        xt = jnp.pad(xt, ((0, 0), (0, H_pad - H)))   # zero cols -> zero conv out

    # Weights flattened consistently with xt's (c_in major, k minor) ordering.
    wt = weights.reshape(C_out, C_in * K).astype(jnp.float32)     # (C_out, K*C_in)

    # --- conv matmul + partial batch statistics (Pallas) --------------------
    yt, sums, sqs = _conv_and_partial_stats(xt, wt, tm=tm)

    # --- tiny per-channel scalar math (glue); divisor = real node count -----
    n = jnp.float32(H)
    mean = jnp.sum(sums, axis=0)[:, 0] / n                        # (C_out,)
    ex2 = jnp.sum(sqs, axis=0)[:, 0] / n
    var = jnp.maximum(ex2 - mean * mean, 0.0)   # biased var, clamped >= 0
    inv_std = jax.lax.rsqrt(var + eps)
    scale = gamma * inv_std
    shift = beta - mean * scale
    ss = jnp.stack([scale, shift], axis=1)                        # (C_out, 2)

    # --- BN apply (Pallas, lane-dense, aliased in-place) ---------------------
    out_t = _bn_apply(yt, ss, tm=tm)                              # (C_out, H_pad)

    # Already channel-major: just drop padding and add N/W singleton dims.
    return out_t[:, :H][None, :, :, None]


# -----------------------------------------------------------------------------
# Pure-JAX reference (for correctness check) and test harness.
# -----------------------------------------------------------------------------
def _reference_forward(data_in, neigh, weights, gamma, beta, eps=1e-5):
    _, C_in, H, _ = data_in.shape
    C_out, _, K = weights.shape
    data_ch = data_in[0, :, :, 0]
    valid = neigh >= 0
    idx = jnp.clip(neigh, 0, H - 1)
    gath = jnp.where(valid[None, :, :], data_ch[:, idx], 0.0)     # (C_in, H, K)
    x = jnp.transpose(gath, (1, 0, 2)).reshape(H, C_in * K)       # (H, C_in*K)
    w = weights.reshape(C_out, C_in * K)
    y = jnp.dot(x, w.T, precision=jax.lax.Precision.HIGHEST)      # (H, C_out)
    mean = jnp.mean(y, axis=0)
    var = jnp.mean((y - mean) ** 2, axis=0)
    yn = (y - mean) * jax.lax.rsqrt(var + eps)
    out = yn * gamma + beta
    return jnp.transpose(out, (1, 0))[None, :, :, None]


def _build_neighbor_table(H, K):
    """Deterministic synthetic octree neighborhood: node h's k-th neighbor is
    h + (k - K//2); out-of-range -> -1 (zero contribution)."""
    h = jnp.arange(H)[:, None]
    off = jnp.arange(K)[None, :] - K // 2
    nb = h + off
    return jnp.where((nb >= 0) & (nb < H), nb, -1).astype(jnp.int32)


if __name__ == "__main__":
    # Small shapes consistent with the module: kernel_size=[3] -> K = 27
    # neighbors, stride=1, H octree nodes.
    C_in, C_out, K, H = 4, 8, 27, 256

    key = jax.random.PRNGKey(0)
    k_data, k_w, k_g, k_b = jax.random.split(key, 4)

    data_in = jax.random.normal(k_data, (1, C_in, H, 1), dtype=jnp.float32)
    neigh = _build_neighbor_table(H, K)
    weights = 0.1 * jax.random.normal(k_w, (C_out, C_in, K), dtype=jnp.float32)
    gamma = 1.0 + 0.1 * jax.random.normal(k_g, (C_out,), dtype=jnp.float32)
    beta = 0.1 * jax.random.normal(k_b, (C_out,), dtype=jnp.float32)

    out = octree_conv_bn(data_in, neigh, weights, gamma, beta)
    jax.block_until_ready(out)

    ref = _reference_forward(data_in, neigh, weights, gamma, beta)

    assert out.shape == (1, C_out, H, 1)
    assert bool(jnp.all(jnp.isfinite(out)))
    assert bool(jnp.allclose(out, ref, atol=1e-2, rtol=1e-2)), float(
        jnp.max(jnp.abs(out - ref)))
    print("KERNEL_OK")
</pallas_src>

<mosaic_0001>
module attributes {stable_mosaic.version = 11 : i64} {
  func.func @_conv_stats_kernel(%arg0: i32, %arg1: memref<108x256xf32, #tpu.memory_space<vmem>>, %arg2: memref<8x108xf32, #tpu.memory_space<vmem>>, %arg3: memref<8x256xf32, #tpu.memory_space<vmem>>, %arg4: memref<1x8x1xf32, #tpu.memory_space<vmem>>, %arg5: memref<1x8x1xf32, #tpu.memory_space<vmem>>) attributes {dimension_semantics = [#tpu.dimension_semantics<parallel>], iteration_bounds = array<i64: 1>, scalar_prefetch = 0 : i64, scratch_operands = 0 : i64, tpu.core_type = #tpu.core_type<tc>, window_params = [{transform_indices = @transform_0, window_bounds = array<i64: 108, 256>}, {pipeline_mode = #tpu.pipeline_mode<synchronous>, transform_indices = @transform_1, window_bounds = array<i64: 8, 108>}, {transform_indices = @transform_2, window_bounds = array<i64: 8, 256>}, {transform_indices = @transform_3, window_bounds = array<i64: 1, 8, 1>}, {transform_indices = @transform_4, window_bounds = array<i64: 1, 8, 1>}]} {
    %c0 = arith.constant 0 : index
    %c0_0 = arith.constant 0 : index
    %0 = vector.load %arg2[%c0, %c0_0] : memref<8x108xf32, #tpu.memory_space<vmem>>, vector<8x108xf32>
    %c0_1 = arith.constant 0 : index
    %c0_2 = arith.constant 0 : index
    %1 = vector.load %arg1[%c0_1, %c0_2] : memref<108x256xf32, #tpu.memory_space<vmem>>, vector<108x256xf32>
    %cst = arith.constant dense<0.000000e+00> : vector<8x256xf32>
    %2 = tpu.matmul %0, %1, %cst {dimension_numbers = #tpu.dot_dimension_numbers<[1], [0], [0], [1], [0, 0, 1, 1], [], []>} : vector<8x108xf32>, vector<108x256xf32>, vector<8x256xf32> -> vector<8x256xf32>
    %c0_3 = arith.constant 0 : index
    %c0_4 = arith.constant 0 : index
    %3 = vector.load %arg3[%c0_3, %c0_4] : memref<8x256xf32, #tpu.memory_space<vmem>>, vector<8x256xf32>
    tpu.vector_store %arg3[%c0_3, %c0_4], %2 {strides = array<i32>} : memref<8x256xf32, #tpu.memory_space<vmem>>, vector<8x256xf32>,
    %cst_5 = arith.constant dense<0.000000e+00> : vector<8xf32>
    %4 = vector.multi_reduction <add>, %2, %cst_5 [1] : vector<8x256xf32> to vector<8xf32>
    %5 = vector.shape_cast %4 : vector<8xf32> to vector<8x1xf32>
    %6 = vector.shape_cast %5 : vector<8x1xf32> to vector<1x8x1xf32>
    %c0_6 = arith.constant 0 : index
    %c0_7 = arith.constant 0 : index
    %c0_8 = arith.constant 0 : index
    %7 = vector.load %arg4[%c0_6, %c0_7, %c0_8] : memref<1x8x1xf32, #tpu.memory_space<vmem>>, vector<1x8x1xf32>
    tpu.vector_store %arg4[%c0_6, %c0_7, %c0_8], %6 {strides = array<i32>} : memref<1x8x1xf32, #tpu.memory_space<vmem>>, vector<1x8x1xf32>,
    %8 = arith.mulf %2, %2 : vector<8x256xf32>
    %cst_9 = arith.constant dense<0.000000e+00> : vector<8xf32>
    %9 = vector.multi_reduction <add>, %8, %cst_9 [1] : vector<8x256xf32> to vector<8xf32>
    %10 = vector.shape_cast %9 : vector<8xf32> to vector<8x1xf32>
    %11 = vector.shape_cast %10 : vector<8x1xf32> to vector<1x8x1xf32>
    %c0_10 = arith.constant 0 : index
    %c0_11 = arith.constant 0 : index
    %c0_12 = arith.constant 0 : index
    %12 = vector.load %arg5[%c0_10, %c0_11, %c0_12] : memref<1x8x1xf32, #tpu.memory_space<vmem>>, vector<1x8x1xf32>
    tpu.vector_store %arg5[%c0_10, %c0_11, %c0_12], %11 {strides = array<i32>} : memref<1x8x1xf32, #tpu.memory_space<vmem>>, vector<1x8x1xf32>,
    return
  }
  func.func @transform_0(%arg0: i32) -> (i32, i32) {
    %c0_i32 = arith.constant 0 : i32
    %c0_i32_0 = arith.constant 0 : i32
    return %c0_i32, %arg0 : i32, i32
  }
  func.func @transform_1(%arg0: i32) -> (i32, i32) {
    %c0_i32 = arith.constant 0 : i32
    %c0_i32_0 = arith.constant 0 : i32
    %c0_i32_1 = arith.constant 0 : i32
    return %c0_i32, %c0_i32_0 : i32, i32
  }
  func.func @transform_2(%arg0: i32) -> (i32, i32) {
    %c0_i32 = arith.constant 0 : i32
    %c0_i32_0 = arith.constant 0 : i32
    return %c0_i32, %arg0 : i32, i32
  }
  func.func @transform_3(%arg0: i32) -> (i32, i32, i32) {
    %c0_i32 = arith.constant 0 : i32
    %c0_i32_0 = arith.constant 0 : i32
    %c0_i32_1 = arith.constant 0 : i32
    return %arg0, %c0_i32, %c0_i32_0 : i32, i32, i32
  }
  func.func @transform_4(%arg0: i32) -> (i32, i32, i32) {
    %c0_i32 = arith.constant 0 : i32
    %c0_i32_0 = arith.constant 0 : i32
    %c0_i32_1 = arith.constant 0 : i32
    return %arg0, %c0_i32, %c0_i32_0 : i32, i32, i32
  }
}

module attributes {stable_mosaic.version = 11 : i64} {
  func.func @_bn_apply_kernel(%arg0: i32, %arg1: memref<8x256xf32, #tpu.memory_space<vmem>>, %arg2: memref<8x2xf32, #tpu.memory_space<vmem>>, %arg3: memref<8x256xf32, #tpu.memory_space<vmem>>) attributes {dimension_semantics = [#tpu.dimension_semantics<parallel>], iteration_bounds = array<i64: 1>, scalar_prefetch = 0 : i64, scratch_operands = 0 : i64, tpu.core_type = #tpu.core_type<tc>, window_params = [{transform_indices = @transform_0, window_bounds = array<i64: 8, 256>}, {pipeline_mode = #tpu.pipeline_mode<synchronous>, transform_indices = @transform_1, window_bounds = array<i64: 8, 2>}, {transform_indices = @transform_2, window_bounds = array<i64: 8, 256>}]} {
    %c0 = arith.constant 0 : index
    %c0_0 = arith.constant 0 : index
    %0 = vector.load %arg2[%c0, %c0_0] : memref<8x2xf32, #tpu.memory_space<vmem>>, vector<8x1xf32>
    %c0_1 = arith.constant 0 : index
    %c1 = arith.constant 1 : index
    %1 = vector.load %arg2[%c0_1, %c1] : memref<8x2xf32, #tpu.memory_space<vmem>>, vector<8x1xf32>
    %c0_2 = arith.constant 0 : index
    %c0_3 = arith.constant 0 : index
    %2 = vector.load %arg1[%c0_2, %c0_3] : memref<8x256xf32, #tpu.memory_space<vmem>>, vector<8x256xf32>
    %3 = vector.broadcast %0 : vector<8x1xf32> to vector<8x256xf32>
    %4 = arith.mulf %2, %3 : vector<8x256xf32>
    %5 = vector.broadcast %1 : vector<8x1xf32> to vector<8x256xf32>
    %6 = arith.addf %4, %5 : vector<8x256xf32>
    %c0_4 = arith.constant 0 : index
    %c0_5 = arith.constant 0 : index
    %7 = vector.load %arg3[%c0_4, %c0_5] : memref<8x256xf32, #tpu.memory_space<vmem>>, vector<8x256xf32>
    tpu.vector_store %arg3[%c0_4, %c0_5], %6 {strides = array<i32>} : memref<8x256xf32, #tpu.memory_space<vmem>>, vector<8x256xf32>,
    return
  }
  func.func @transform_0(%arg0: i32) -> (i32, i32) {
    %c0_i32 = arith.constant 0 : i32
    %c0_i32_0 = arith.constant 0 : i32
    return %c0_i32, %arg0 : i32, i32
  }
  func.func @transform_1(%arg0: i32) -> (i32, i32) {
    %c0_i32 = arith.constant 0 : i32
    %c0_i32_0 = arith.constant 0 : i32
    %c0_i32_1 = arith.constant 0 : i32
    return %c0_i32, %c0_i32_0 : i32, i32
  }
  func.func @transform_2(%arg0: i32) -> (i32, i32) {
    %c0_i32 = arith.constant 0 : i32
    %c0_i32_0 = arith.constant 0 : i32
    return %c0_i32, %arg0 : i32, i32
  }
}

</mosaic_0001>

<llo_original>
// kernel: octree_conv_bn.3
$region0: #{octree_conv_bn.3}
  #allocation0 [shape = 'u32[]', space=smem, size = 0x4, offset = 0x4, fixed_abs, tag = 'smem constant byte address 0x4 - core index']
  #allocation1 [shape = 'u32[144,128]{1,0:T(1,128)}', space=vmem, size = 0x12000, scoped, tag = 'internal scratch']
  %s0 = inlined_call_operand.vmem [shape: f32[8,256], index: 0, kind: input, shape index: {}, may-alias: {0,2}]
  %s1 = inlined_call_operand.vmem [shape: f32[8,2], index: 1, kind: input, shape index: {}]
  %s2 = inlined_call_operand.vmem [shape: f32[8,256], index: 2, kind: output, shape index: {}, may-alias: {0,2}]
  %s3 = sld [smem:[#allocation0]]
  $region18: #{octree_conv_bn.3} parent=0
    _
  %s5 = ssub.s32 1, %s3
  %s6 = scalar_select 0, %s5, %s3
  // Predicated region
  $region2: #{octree_conv_bn.3} parent=0 // pred_check
    _
  $region3: #{octree_conv_bn.3} parent=0 // pred_check_branch
    %8 = sbr.rel (0) target = $region5
  $region4: #{octree_conv_bn.3} parent=0 // pred_region
    _
  $region5: #{octree_conv_bn.3} parent=0 // pred_fallthru
    _
  // Predicated region
  $region6: #{octree_conv_bn.3} parent=0 // pred_check
    _
  $region7: #{octree_conv_bn.3} parent=0 // pred_check_branch
    %10 = sbr.rel (0) target = $region9
  $region8: #{octree_conv_bn.3} parent=0 // pred_region
    _
  $region9: #{octree_conv_bn.3} parent=0 // pred_fallthru
    _
  %v11 = vld [vmem:[%s1] sm:$0xff]
  %v12 = vld [vmem:[%s0] sm:$0xff]
  %v13 = vld [vmem:[%s0 + $0x8] sm:$0xff]
  %15 = vset.pattern.permute.xlu0 0
  %16 = vperm.xlu0 %15, %v11
  %v17 = vpop.permute.xlu0 %16
  %v19 = vmul.f32 %v12, %v17
  %v20 = vmul.f32 %v13, %v17
  %21 = vset.pattern.permute.xlu0 1
  %22 = vperm.xlu0 %21, %v11
  %v23 = vpop.permute.xlu0 %22
  %v25 = vadd.f32 %v19, %v23
  %v26 = vadd.f32 %v20, %v23
  %27 = vst [vmem:[%s2] sm:$0xff] %v25
  %28 = vst [vmem:[%s2 + $0x8] sm:$0xff] %v26
  // Predicated region
  $region10: #{octree_conv_bn.3} parent=0 // pred_check
    _
  $region11: #{octree_conv_bn.3} parent=0 // pred_check_branch
    %30 = sbr.rel (0) target = $region13
  $region12: #{octree_conv_bn.3} parent=0 // pred_region
    _
  $region13: #{octree_conv_bn.3} parent=0 // pred_fallthru
    _
  // Predicated region
  $region14: #{octree_conv_bn.3} parent=0 // pred_check
    _
  $region15: #{octree_conv_bn.3} parent=0 // pred_check_branch
    %32 = sbr.rel (0) target = $region17
  $region16: #{octree_conv_bn.3} parent=0 // pred_region
    _
  $region17: #{octree_conv_bn.3} parent=0 // pred_fallthru
    _

// kernel: octree_conv_bn.2
$region0: #{octree_conv_bn.2}
  #allocation0 [shape = 'u32[]', space=smem, size = 0x4, offset = 0x4, fixed_abs, tag = 'smem constant byte address 0x4 - core index']
  #allocation1 [shape = 'u32[144,128]{1,0:T(1,128)}', space=vmem, size = 0x12000, scoped, tag = 'internal scratch']
  %s0 = inlined_call_operand.vmem [shape: f32[108,256], index: 0, kind: input, shape index: {}]
  %s1 = inlined_call_operand.vmem [shape: f32[8,108], index: 1, kind: input, shape index: {}]
  %s2 = inlined_call_operand.vmem [shape: f32[8,256], index: 2, kind: output, shape index: {0}]
  %s3 = inlined_call_operand.vmem [shape: f32[1,8,1], index: 3, kind: output, shape index: {1}]
  %s4 = inlined_call_operand.vmem [shape: f32[1,8,1], index: 4, kind: output, shape index: {2}]
  %5 = xla_tuple %s2, %s3, %s4
  %s6 = sld [smem:[#allocation0]]
  $region34: #{octree_conv_bn.2} parent=0
    _
  %s8 = ssub.s32 1, %s6
  %s9 = scalar_select 0, %s8, %s6
  // Predicated region
  $region2: #{octree_conv_bn.2} parent=0 // pred_check
    _
  $region3: #{octree_conv_bn.2} parent=0 // pred_check_branch
    %11 = sbr.rel (0) target = $region5
  $region4: #{octree_conv_bn.2} parent=0 // pred_region
    _
  $region5: #{octree_conv_bn.2} parent=0 // pred_fallthru
    _
  // Predicated region
  $region6: #{octree_conv_bn.2} parent=0 // pred_check
    _
  $region7: #{octree_conv_bn.2} parent=0 // pred_check_branch
    %13 = sbr.rel (0) target = $region9
  $region8: #{octree_conv_bn.2} parent=0 // pred_region
    _
  $region9: #{octree_conv_bn.2} parent=0 // pred_fallthru
    _
  %v14 = vld [vmem:[%s1] sm:$0xff]
  %v15 = vld [vmem:[%s0] sm:$0xff]
  %v16 = vld [vmem:[%s0 + $0x8] sm:$0xff]
  %v17 = vld [vmem:[%s0 + $0x10] sm:$0xff]
  %v18 = vld [vmem:[%s0 + $0x18] sm:$0xff]
  %v19 = vld [vmem:[%s0 + $0x20] sm:$0xff]
  %v20 = vld [vmem:[%s0 + $0x28] sm:$0xff]
  %v21 = vld [vmem:[%s0 + $0x30] sm:$0xff]
  %v22 = vld [vmem:[%s0 + $0x38] sm:$0xff]
  %v23 = vld [vmem:[%s0 + $0x40] sm:$0xff]
  %v24 = vld [vmem:[%s0 + $0x48] sm:$0xff]
  %v25 = vld [vmem:[%s0 + $0x50] sm:$0xff]
  %v26 = vld [vmem:[%s0 + $0x58] sm:$0xff]
  %v27 = vld [vmem:[%s0 + $0x60] sm:$0xff]
  %v28 = vld [vmem:[%s0 + $0x68] sm:$0xff]
  %v29 = vld [vmem:[%s0 + $0x70] sm:$0xff]
  %v30 = vld [vmem:[%s0 + $0x78] sm:$0xff]
  %v31 = vld [vmem:[%s0 + $0x80] sm:$0xff]
  %v32 = vld [vmem:[%s0 + $0x88] sm:$0xff]
  %v33 = vld [vmem:[%s0 + $0x90] sm:$0xff]
  %v34 = vld [vmem:[%s0 + $0x98] sm:$0xff]
  %v35 = vld [vmem:[%s0 + $0xa0] sm:$0xff]
  %v36 = vld [vmem:[%s0 + $0xa8] sm:$0xff]
  %v37 = vld [vmem:[%s0 + $0xb0] sm:$0xff]
  %v38 = vld [vmem:[%s0 + $0xb8] sm:$0xff]
  %v39 = vld [vmem:[%s0 + $0xc0] sm:$0xff]
  %v40 = vld [vmem:[%s0 + $0xc8] sm:$0xff]
  %v41 = vld [vmem:[%s0 + $0xd0] sm:$0xf]
  %v42 = vld [vmem:[%s0 + $0xd8] sm:$0xf]
  %vm43 = vcmask 883712
  %v45 = vsel %vm43, %v14, 0
  %vm47 = vcmask 1043456
  %v49 = vsel %vm47, %v41, 0
  %v52 = vsel %vm47, %v42, 0
  %54 = vmatprep.subr.mxu0 %v16
  %55 = vmatpush1.msra.mxu0 %v15
  %56 = vmatprep.subr.mxu0 %v18
  %57 = vmatpush1.msra.mxu0 %v17
  %58 = vmatprep.subr.mxu0 %v20
  %59 = vmatpush1.msra.mxu0 %v19
  %60 = vmatprep.subr.mxu0 %v22
  %61 = vmatpush1.msra.mxu0 %v21
  %62 = vmatprep.subr.mxu0 %v24
  %63 = vmatpush1.msra.mxu0 %v23
  %64 = vmatprep.subr.mxu0 %v26
  %65 = vmatpush1.msra.mxu0 %v25
  %66 = vmatprep.subr.mxu0 %v28
  %67 = vmatpush1.msra.mxu0 %v27
  %68 = vmatprep.subr.mxu0 %v30
  %69 = vmatpush1.msra.mxu0 %v29
  %70 = vmatprep.subr.mxu0 %v32
  %71 = vmatpush1.msra.mxu0 %v31
  %72 = vmatprep.subr.mxu0 %v34
  %73 = vmatpush1.msra.mxu0 %v33
  %74 = vmatprep.subr.mxu0 %v36
  %75 = vmatpush1.msra.mxu0 %v35
  %76 = vmatprep.subr.mxu0 %v38
  %77 = vmatpush1.msra.mxu0 %v37
  %78 = vmatprep.subr.mxu0 %v40
  %79 = vmatpush1.msra.mxu0 %v39
  %80 = vmatprep.subr.mxu0 %v52
  %81 = vmatpush1.msra.mxu0 %v49
  %82 = vmatprep.subr.mxu0 0.0
  %83 = vmatpush1.msra.mxu0 0.0
  %84 = vmatprep.subr.mxu0 0.0
  %85 = vmatpush1.msra.mxu0 0.0
  %86 = vmatprep.subr.mxu0 0.0
  %87 = vmatpush1.msra.mxu0 0.0
  %88 = vmatprep.subr.mxu0 0.0
  %89 = vmatpush1.msra.mxu0 0.0
  %90 = vmatprep.subr.mxu0 0.0
  %91 = vmatpush1.msra.mxu0 0.0
  %92 = vmatprep.subr.mxu0 0.0
  %93 = vmatpush1.msra.mxu0 0.0
  %94 = vmatprep.subr.mxu0 0.0
  %95 = vmatpush1.msra.mxu0 0.0
  %96 = vmatprep.subr.mxu0 0.0
  %97 = vmatpush1.msra.mxu0 0.0
  %98 = vmatprep.subr.mxu0 0.0
  %99 = vmatpush1.msra.mxu0 0.0
  %100 = vmatprep.subr.mxu0 0.0
  %101 = vmatpush1.msra.mxu0 0.0
  %102 = vmatprep.subr.mxu0 0.0
  %103 = vmatpush1.msra.mxu0 0.0
  %104 = vmatprep.subr.mxu0 0.0
  %105 = vmatpush1.msra.mxu0 0.0
  %106 = vmatprep.subr.mxu0 0.0
  %107 = vmatpush1.msra.mxu0 0.0
  %108 = vmatprep.subr.mxu0 0.0
  %109 = vmatpush1.msra.mxu0 0.0
  %110 = vmatprep.subr.mxu0 0.0
  %111 = vmatpush1.msra.mxu0 0.0
  %112 = vmatprep.subr.mxu0 0.0
  %113 = vmatpush1.msra.mxu0 0.0
  %114 = vmatprep.subr.mxu0 0.0
  %115 = vmatpush1.msra.mxu0 0.0
  %116 = vmatprep.subr.mxu0 0.0
  %117 = vmatpush1.msra.mxu0 0.0
  %118 = vmatprep.mubr.f32.mxu0 0.0
  %119 = vmatmul.mubr.f32.gmra.mrb[0].mxu0 %v45
  %v120 = vpop.f32.mrb[0].mxu0
  %v121 = vadd.f32 0.0, %v120
  %v122 = vpop.f32.mrb[0].mxu0
  %v123 = vadd.f32 0.0, %v122
  %124 = vdwg.mxu0
  %125 = vst [vmem:[%s2] sm:$0xff] %v121
  %126 = vst [vmem:[%s2 + $0x8] sm:$0xff] %v123
  %v127 = vadd.f32 %v121, %v123
  %128 = vadd.xlane.f32.xlu0 %v127
  %v129 = vpop.xlane.xlu0 %128
  %vm130 = vcmask 7168
  %131 = vst.msk [vmem:[%s3] sm:$0xff] %vm130, %v129
  %v132 = vmul.f32 %v121, %v121
  %v133 = vmul.f32 %v123, %v123
  %v134 = vadd.f32 %v132, %v133
  %135 = vadd.xlane.f32.xlu0 %v134
  %v136 = vpop.xlane.xlu0 %135
  %137 = vst.msk [vmem:[%s4] sm:$0xff] %vm130, %v136
  // Predicated region
  $region10: #{octree_conv_bn.2} parent=0 // pred_check
    _
  $region11: #{octree_conv_bn.2} parent=0 // pred_check_branch
    %139 = sbr.rel (0) target = $region13
  $region12: #{octree_conv_bn.2} parent=0 // pred_region
    _
  $region13: #{octree_conv_bn.2} parent=0 // pred_fallthru
    _
  // Predicated region
  $region14: #{octree_conv_bn.2} parent=0 // pred_check
    _
  $region15: #{octree_conv_bn.2} parent=0 // pred_check_branch
    %141 = sbr.rel (0) target = $region17
  $region16: #{octree_conv_bn.2} parent=0 // pred_region
    _
  $region17: #{octree_conv_bn.2} parent=0 // pred_fallthru
    _
  // Predicated region
  $region18: #{octree_conv_bn.2} parent=0 // pred_check
    _
  $region19: #{octree_conv_bn.2} parent=0 // pred_check_branch
    %143 = sbr.rel (0) target = $region21
  $region20: #{octree_conv_bn.2} parent=0 // pred_region
    _
  $region21: #{octree_conv_bn.2} parent=0 // pred_fallthru
    _
  // Predicated region
  $region22: #{octree_conv_bn.2} parent=0 // pred_check
    _
  $region23: #{octree_conv_bn.2} parent=0 // pred_check_branch
    %145 = sbr.rel (0) target = $region25
  $region24: #{octree_conv_bn.2} parent=0 // pred_region
    _
  $region25: #{octree_conv_bn.2} parent=0 // pred_fallthru
    _
  // Predicated region
  $region26: #{octree_conv_bn.2} parent=0 // pred_check
    _
  $region27: #{octree_conv_bn.2} parent=0 // pred_check_branch
    %147 = sbr.rel (0) target = $region29
  $region28: #{octree_conv_bn.2} parent=0 // pred_region
    _
  $region29: #{octree_conv_bn.2} parent=0 // pred_fallthru
    _
  // Predicated region
  $region30: #{octree_conv_bn.2} parent=0 // pred_check
    _
  $region31: #{octree_conv_bn.2} parent=0 // pred_check_branch
    %149 = sbr.rel (0) target = $region33
  $region32: #{octree_conv_bn.2} parent=0 // pred_region
    _
  $region33: #{octree_conv_bn.2} parent=0 // pred_fallthru
    _

</llo_original>
